<compile_context>
chip_gen: v5e
topology: v5e:2x2
jax: 0.10.0
libtpu: 0.0.40
codegen_flags: <defaults>
</compile_context>

<pallas_src>
import numpy as np
import jax
import jax.numpy as jnp
from jax.experimental import pallas as pl
from jax.experimental.pallas import tpu as pltpu

_LANES = 128
_MAX_BLOCK_ROWS = 1024   # (1024,128) f32 tile = 512 KiB; 4 dbl-buffered input
                         # streams + dbl-buffered elem output ~= 5 MiB VMEM,
                         # comfortably inside scoped VMEM on v5e/v6e/v7x.


def _loss_eq_kernel(d_ref, a_ref, n_ref, logc_ref, elem_ref, psum_ref):
    d = d_ref[...]        # w[p2] - w[p1]
    a = a_ref[...]        # total - s1  (= s2)
    n = n_ref[...]        # total
    logc = logc_ref[...]  # log C(total, s1)

    # softplus(d) = max(d,0) + log1p(exp(-|d|))   (stable, 1 exp + 1 log1p)
    sp = jnp.maximum(d, 0.0) + jnp.log1p(jnp.exp(-jnp.abs(d)))

    # Binomial(n, p).log_prob(k) = logC + k*log(p) + (n-k)*log(1-p)
    #                            = logC + a*d - n*softplus(d)
    # Padded elements (d=a=n=logc=0) contribute exactly 0 -> no mask needed.
    log_prob = logc + a * d - n * sp

    elem_ref[...] = log_prob

    # Per-block partial sum, lane-dense (8, 128): pure VPU adds over the
    # leading (tile-group) axis; final tiny reduction happens in the wrapper.
    block_rows = log_prob.shape[0]
    psum_ref[...] = jnp.sum(
        log_prob.reshape(block_rows // 8, 8, _LANES), axis=0)


def loss_eq_forward(weights, p1_idx, p2_idx, s1, total):
    """weights: (P,) f32; p1_idx/p2_idx: (M,) i32; s1/total: (M,) f32."""
    M = int(p1_idx.shape[0])

    rows_needed = pl.cdiv(M, _LANES)
    block_rows = min(_MAX_BLOCK_ROWS, ((rows_needed + 7) // 8) * 8)
    n_blocks = pl.cdiv(rows_needed, block_rows)
    rows = n_blocks * block_rows
    m_pad = rows * _LANES
    pad = m_pad - M

    # Pad the raw inputs (indices with 0, scores with 0) before the gather /
    # lgamma / subtract producers so all padded operands come out of a single
    # fused XLA producer each; padding contributes exactly 0 to every stream.
    p1p = jnp.pad(p1_idx, (0, pad))
    p2p = jnp.pad(p2_idx, (0, pad))
    s1p = jnp.pad(s1.astype(jnp.float32), (0, pad))
    nfp = jnp.pad(total.astype(jnp.float32), (0, pad))

    # Glue: per-matchup weight gather + fold of the two weight streams into
    # one difference stream (index lookup, not the hot path).
    # TODO(synk): an in-kernel gather of a VMEM-resident weights table would
    # save this HBM round-trip, but only if jnp.take lowers cleanly in Mosaic.
    d = (weights[p2p] - weights[p1p]).reshape(rows, _LANES)
    a = (nfp - s1p).reshape(rows, _LANES)
    n2 = nfp.reshape(rows, _LANES)

    # TODO(synk): lax.lgamma has no Mosaic lowering; the binomial coefficient
    # is weight-independent, so precompute it here and stream it.
    logc = (jax.lax.lgamma(nfp + 1.0)
            - jax.lax.lgamma(s1p + 1.0)
            - jax.lax.lgamma(nfp - s1p + 1.0)).reshape(rows, _LANES)

    tile_spec = pl.BlockSpec((block_rows, _LANES), lambda i: (i, 0))

    elem, psums = pl.pallas_call(
        _loss_eq_kernel,
        out_shape=(jax.ShapeDtypeStruct((rows, _LANES), jnp.float32),
                   jax.ShapeDtypeStruct((n_blocks * 8, _LANES), jnp.float32)),
        grid_spec=pltpu.PrefetchScalarGridSpec(
            num_scalar_prefetch=0,
            grid=(n_blocks,),
            in_specs=[tile_spec] * 4,
            out_specs=(tile_spec,
                       pl.BlockSpec((8, _LANES), lambda i: (i, 0))),
        ),
        compiler_params=pltpu.CompilerParams(
            dimension_semantics=("parallel",),
            vmem_limit_bytes=32 << 20),
    )(d, a, n2, logc)

    loss_val = -jnp.sum(psums)
    loss_elem = elem.reshape(-1)[:M]
    return loss_val, loss_elem


def _reference(weights, p1_idx, p2_idx, s1, total):
    w1 = weights[p1_idx]
    w2 = weights[p2_idx]
    p = jnp.exp(w1) / (jnp.exp(w1) + jnp.exp(w2))
    s1f = s1.astype(jnp.float32)
    nf = total.astype(jnp.float32)
    logc = (jax.lax.lgamma(nf + 1.0) - jax.lax.lgamma(s1f + 1.0)
            - jax.lax.lgamma(nf - s1f + 1.0))
    le = logc + s1f * jnp.log(p) + (nf - s1f) * jnp.log1p(-p)
    return -jnp.sum(le), le


if __name__ == "__main__":
    # Deterministic synthetic "module __init__": P players, M matchups.
    P = 32   # len(player_list)
    M = 8    # len(matchups)

    key = jax.random.PRNGKey(0)
    k_r, k_p1, k_p2, k_s1, k_s2 = jax.random.split(key, 5)

    # Rating-dict branch of __init__, done deterministically in-script.
    ratings = 1000.0 + 300.0 * jax.random.uniform(k_r, (P,), jnp.float32)
    ratings = np.asarray(ratings, dtype=np.float64)
    ratings_norm = (ratings - np.min(ratings)) / np.mean(ratings) * 3.0 + 1.0
    weights = jnp.asarray(np.power(np.e, ratings_norm), dtype=jnp.float32)

    p1_idx = jax.random.randint(k_p1, (M,), 0, P, dtype=jnp.int32)
    p2_idx = (p1_idx + 1 + jax.random.randint(k_p2, (M,), 0, P - 1,
                                              dtype=jnp.int32)) % P
    s1 = jax.random.randint(k_s1, (M,), 0, 4, dtype=jnp.int32).astype(jnp.float32)
    s2 = jax.random.randint(k_s2, (M,), 1, 4, dtype=jnp.int32).astype(jnp.float32)
    total = s1 + s2

    loss_val, loss_elem = jax.jit(loss_eq_forward)(weights, p1_idx, p2_idx,
                                                   s1, total)
    jax.block_until_ready((loss_val, loss_elem))

    ref_loss, ref_elem = _reference(weights, p1_idx, p2_idx, s1, total)
    np.testing.assert_allclose(np.asarray(loss_val), np.asarray(ref_loss),
                               rtol=1e-4, atol=1e-4)
    np.testing.assert_allclose(np.asarray(loss_elem), np.asarray(ref_elem),
                               rtol=1e-4, atol=1e-4)

    # Mirror of torch return: (loss_val, loss_elem_vect.detach().cpu().numpy())
    _ = (float(loss_val), np.asarray(loss_elem))
    print("KERNEL_OK")
</pallas_src>

<mosaic_0001>
module attributes {stable_mosaic.version = 11 : i64} {
  func.func @_loss_eq_kernel(%arg0: i32, %arg1: memref<8x128xf32, #tpu.memory_space<vmem>>, %arg2: memref<8x128xf32, #tpu.memory_space<vmem>>, %arg3: memref<8x128xf32, #tpu.memory_space<vmem>>, %arg4: memref<8x128xf32, #tpu.memory_space<vmem>>, %arg5: memref<8x128xf32, #tpu.memory_space<vmem>>, %arg6: memref<8x128xf32, #tpu.memory_space<vmem>>) attributes {dimension_semantics = [#tpu.dimension_semantics<parallel>], iteration_bounds = array<i64: 1>, scalar_prefetch = 0 : i64, scratch_operands = 0 : i64, tpu.core_type = #tpu.core_type<tc>, window_params = [{transform_indices = @transform_0, window_bounds = array<i64: 8, 128>}, {transform_indices = @transform_1, window_bounds = array<i64: 8, 128>}, {transform_indices = @transform_2, window_bounds = array<i64: 8, 128>}, {transform_indices = @transform_3, window_bounds = array<i64: 8, 128>}, {transform_indices = @transform_4, window_bounds = array<i64: 8, 128>}, {transform_indices = @transform_5, window_bounds = array<i64: 8, 128>}]} {
    %c0 = arith.constant 0 : index
    %c0_0 = arith.constant 0 : index
    %0 = vector.load %arg1[%c0, %c0_0] : memref<8x128xf32, #tpu.memory_space<vmem>>, vector<8x128xf32>
    %c0_1 = arith.constant 0 : index
    %c0_2 = arith.constant 0 : index
    %1 = vector.load %arg2[%c0_1, %c0_2] : memref<8x128xf32, #tpu.memory_space<vmem>>, vector<8x128xf32>
    %c0_3 = arith.constant 0 : index
    %c0_4 = arith.constant 0 : index
    %2 = vector.load %arg3[%c0_3, %c0_4] : memref<8x128xf32, #tpu.memory_space<vmem>>, vector<8x128xf32>
    %c0_5 = arith.constant 0 : index
    %c0_6 = arith.constant 0 : index
    %3 = vector.load %arg4[%c0_5, %c0_6] : memref<8x128xf32, #tpu.memory_space<vmem>>, vector<8x128xf32>
    %cst = arith.constant 0.000000e+00 : f32
    %4 = vector.broadcast %cst : f32 to vector<8x128xf32>
    %5 = arith.maximumf %0, %4 : vector<8x128xf32>
    %6 = math.absf %0 : vector<8x128xf32>
    %cst_7 = arith.constant 0.000000e+00 : f32
    %7 = vector.broadcast %cst_7 : f32 to vector<8x128xf32>
    %8 = arith.subf %7, %6 : vector<8x128xf32>
    %9 = math.exp %8 : vector<8x128xf32>
    %10 = math.log1p %9 : vector<8x128xf32>
    %11 = arith.addf %5, %10 : vector<8x128xf32>
    %12 = arith.mulf %1, %0 : vector<8x128xf32>
    %13 = arith.addf %3, %12 : vector<8x128xf32>
    %14 = arith.mulf %2, %11 : vector<8x128xf32>
    %15 = arith.subf %13, %14 : vector<8x128xf32>
    %c0_8 = arith.constant 0 : index
    %c0_9 = arith.constant 0 : index
    %16 = vector.load %arg5[%c0_8, %c0_9] : memref<8x128xf32, #tpu.memory_space<vmem>>, vector<8x128xf32>
    tpu.vector_store %arg5[%c0_8, %c0_9], %15 {strides = array<i32>} : memref<8x128xf32, #tpu.memory_space<vmem>>, vector<8x128xf32>,
    %17 = vector.shape_cast %15 : vector<8x128xf32> to vector<1x8x128xf32>
    %cst_10 = arith.constant dense<0.000000e+00> : vector<8x128xf32>
    %18 = vector.multi_reduction <add>, %17, %cst_10 [0] : vector<1x8x128xf32> to vector<8x128xf32>
    %c0_11 = arith.constant 0 : index
    %c0_12 = arith.constant 0 : index
    %19 = vector.load %arg6[%c0_11, %c0_12] : memref<8x128xf32, #tpu.memory_space<vmem>>, vector<8x128xf32>
    tpu.vector_store %arg6[%c0_11, %c0_12], %18 {strides = array<i32>} : memref<8x128xf32, #tpu.memory_space<vmem>>, vector<8x128xf32>,
    return
  }
  func.func @transform_0(%arg0: i32) -> (i32, i32) {
    %c0_i32 = arith.constant 0 : i32
    %c0_i32_0 = arith.constant 0 : i32
    return %arg0, %c0_i32 : i32, i32
  }
  func.func @transform_1(%arg0: i32) -> (i32, i32) {
    %c0_i32 = arith.constant 0 : i32
    %c0_i32_0 = arith.constant 0 : i32
    return %arg0, %c0_i32 : i32, i32
  }
  func.func @transform_2(%arg0: i32) -> (i32, i32) {
    %c0_i32 = arith.constant 0 : i32
    %c0_i32_0 = arith.constant 0 : i32
    return %arg0, %c0_i32 : i32, i32
  }
  func.func @transform_3(%arg0: i32) -> (i32, i32) {
    %c0_i32 = arith.constant 0 : i32
    %c0_i32_0 = arith.constant 0 : i32
    return %arg0, %c0_i32 : i32, i32
  }
  func.func @transform_4(%arg0: i32) -> (i32, i32) {
    %c0_i32 = arith.constant 0 : i32
    %c0_i32_0 = arith.constant 0 : i32
    return %arg0, %c0_i32 : i32, i32
  }
  func.func @transform_5(%arg0: i32) -> (i32, i32) {
    %c0_i32 = arith.constant 0 : i32
    %c0_i32_0 = arith.constant 0 : i32
    return %arg0, %c0_i32 : i32, i32
  }
}

</mosaic_0001>

<llo_original>
// kernel: loss_eq_forward.1
$region0: #{loss_eq_forward.1}
  #allocation0 [shape = 'u32[]', space=smem, size = 0x4, offset = 0x4, fixed_abs, tag = 'smem constant byte address 0x4 - core index']
  #allocation1 [shape = 'u32[72,128]{1,0:T(1,128)}', space=vmem, size = 0x9000, scoped, tag = 'internal scratch']
  %s0 = inlined_call_operand.vmem [shape: f32[8,128], index: 0, kind: input, shape index: {}]
  %s1 = inlined_call_operand.vmem [shape: f32[8,128], index: 1, kind: input, shape index: {}]
  %s2 = inlined_call_operand.vmem [shape: f32[8,128], index: 2, kind: input, shape index: {}]
  %s3 = inlined_call_operand.vmem [shape: f32[8,128], index: 3, kind: input, shape index: {}]
  %s4 = inlined_call_operand.vmem [shape: f32[8,128], index: 4, kind: output, shape index: {0}]
  %s5 = inlined_call_operand.vmem [shape: f32[8,128], index: 5, kind: output, shape index: {1}]
  %6 = xla_tuple %s4, %s5
  %s7 = sld [smem:[#allocation0]]
  $region34: #{loss_eq_forward.1} parent=0
    _
  %s9 = ssub.s32 1, %s7
  %s10 = scalar_select 0, %s9, %s7
  // Predicated region
  $region2: #{loss_eq_forward.1} parent=0 // pred_check
    _
  $region3: #{loss_eq_forward.1} parent=0 // pred_check_branch
    %12 = sbr.rel (0) target = $region5
  $region4: #{loss_eq_forward.1} parent=0 // pred_region
    _
  $region5: #{loss_eq_forward.1} parent=0 // pred_fallthru
    _
  // Predicated region
  $region6: #{loss_eq_forward.1} parent=0 // pred_check
    _
  $region7: #{loss_eq_forward.1} parent=0 // pred_check_branch
    %14 = sbr.rel (0) target = $region9
  $region8: #{loss_eq_forward.1} parent=0 // pred_region
    _
  $region9: #{loss_eq_forward.1} parent=0 // pred_fallthru
    _
  // Predicated region
  $region10: #{loss_eq_forward.1} parent=0 // pred_check
    _
  $region11: #{loss_eq_forward.1} parent=0 // pred_check_branch
    %16 = sbr.rel (0) target = $region13
  $region12: #{loss_eq_forward.1} parent=0 // pred_region
    _
  $region13: #{loss_eq_forward.1} parent=0 // pred_fallthru
    _
  // Predicated region
  $region14: #{loss_eq_forward.1} parent=0 // pred_check
    _
  $region15: #{loss_eq_forward.1} parent=0 // pred_check_branch
    %18 = sbr.rel (0) target = $region17
  $region16: #{loss_eq_forward.1} parent=0 // pred_region
    _
  $region17: #{loss_eq_forward.1} parent=0 // pred_fallthru
    _
  %v19 = vld [vmem:[%s0] sm:$0xff]
  %v20 = vld [vmem:[%s1] sm:$0xff]
  %v21 = vld [vmem:[%s2] sm:$0xff]
  %v22 = vld [vmem:[%s3] sm:$0xff]
  %v23 = vmax.f32 %v19, 0.0
  %v24 = vand.u32 2147483647, %v19
  %v25 = vsub.f32 0.0, %v24
  %v26 = vmul.f32 %v25, 1.442695
  %v27 = vpow.pop %v26
  %v28 = vadd.f32 %v27, 1.0
  %v29 = vlog2.pop %v28
  %v30 = vmul.f32 %v29, 0.6931472
  %v31 = vmul.f32 -0.5, %v27
  %v32 = vadd.f32 %v31, 1.0
  %v33 = vmul.f32 %v32, %v27
  %v34 = vand.u32 2147483647, %v27
  %vm35 = vcmp.lt.f32.partialorder %v34, 0.0004427343
  %v36 = vsel %vm35, %v33, %v30
  %v37 = vadd.f32 %v23, %v36
  %v38 = vmul.f32 %v20, %v19
  %v39 = vadd.f32 %v22, %v38
  %v40 = vmul.f32 %v21, %v37
  %v41 = vsub.f32 %v39, %v40
  %42 = vst [vmem:[%s4] sm:$0xff] %v41
  %v43 = vadd.f32 %v41, 0.0
  %44 = vst [vmem:[%s5] sm:$0xff] %v43
  // Predicated region
  $region18: #{loss_eq_forward.1} parent=0 // pred_check
    _
  $region19: #{loss_eq_forward.1} parent=0 // pred_check_branch
    %46 = sbr.rel (0) target = $region21
  $region20: #{loss_eq_forward.1} parent=0 // pred_region
    _
  $region21: #{loss_eq_forward.1} parent=0 // pred_fallthru
    _
  // Predicated region
  $region22: #{loss_eq_forward.1} parent=0 // pred_check
    _
  $region23: #{loss_eq_forward.1} parent=0 // pred_check_branch
    %48 = sbr.rel (0) target = $region25
  $region24: #{loss_eq_forward.1} parent=0 // pred_region
    _
  $region25: #{loss_eq_forward.1} parent=0 // pred_fallthru
    _
  // Predicated region
  $region26: #{loss_eq_forward.1} parent=0 // pred_check
    _
  $region27: #{loss_eq_forward.1} parent=0 // pred_check_branch
    %50 = sbr.rel (0) target = $region29
  $region28: #{loss_eq_forward.1} parent=0 // pred_region
    _
  $region29: #{loss_eq_forward.1} parent=0 // pred_fallthru
    _
  // Predicated region
  $region30: #{loss_eq_forward.1} parent=0 // pred_check
    _
  $region31: #{loss_eq_forward.1} parent=0 // pred_check_branch
    %52 = sbr.rel (0) target = $region33
  $region32: #{loss_eq_forward.1} parent=0 // pred_region
    _
  $region33: #{loss_eq_forward.1} parent=0 // pred_fallthru
    _

</llo_original>
